<compile_context>
chip_gen: v7x
topology: tpu7x:2x2x1
jax: 0.10.0
libtpu: 0.0.40
codegen_flags: <defaults>
</compile_context>

<pallas_src>
import jax
import jax.numpy as jnp
from jax.experimental import pallas as pl
from jax.experimental.pallas import tpu as pltpu

INPUT_FEATURES = 10
INPUT_TIMEPOINTS = 48
FLAT = INPUT_FEATURES * INPUT_TIMEPOINTS  # 480
HIDDEN = 120
BOTTLENECK = 60
NEG_SLOPE = 0.01  # nn.LeakyReLU default

# Lane-dense padded sizes for the small inner dims.
HIDDEN_PAD = 128
BOTTLENECK_PAD = 128


def _round_up(n, m):
    return ((n + m - 1) // m) * m


def _leaky_relu(x):
    return jnp.where(x > 0, x, NEG_SLOPE * x)


def autoencoder_kernel(x_ref,
                       w1_ref, b1_ref,
                       w2_ref, b2_ref,
                       w3_ref, b3_ref,
                       w4_ref, b4_ref,
                       out_ref):
    # Cast f32 -> bf16 in-kernel: no separate XLA pass over the input in HBM.
    x = x_ref[...].astype(jnp.bfloat16)  # (tb, 480)

    # encoder: Linear(480,120) -> LeakyReLU -> [Dropout=id] -> Linear(120,60) -> LeakyReLU -> [Dropout=id]
    h = jnp.dot(x, w1_ref[...], preferred_element_type=jnp.float32) + b1_ref[...]
    h = _leaky_relu(h).astype(jnp.bfloat16)                      # (tb, 128)
    z = jnp.dot(h, w2_ref[...], preferred_element_type=jnp.float32) + b2_ref[...]
    z = _leaky_relu(z).astype(jnp.bfloat16)                      # (tb, 128)

    # decoder: Linear(60,120) -> LeakyReLU -> [Dropout=id] -> Linear(120,480)
    d = jnp.dot(z, w3_ref[...], preferred_element_type=jnp.float32) + b3_ref[...]
    d = _leaky_relu(d).astype(jnp.bfloat16)                      # (tb, 128)
    out = jnp.dot(d, w4_ref[...], preferred_element_type=jnp.float32) + b4_ref[...]  # (tb, 480)

    out_ref[...] = out.astype(out_ref.dtype)


def _pad_weight(w, in_pad, out_pad):
    """(fan_in, fan_out) f32 -> zero-padded (in_pad, out_pad) bf16."""
    fi, fo = w.shape
    wp = jnp.zeros((in_pad, out_pad), jnp.float32).at[:fi, :fo].set(w)
    return wp.astype(jnp.bfloat16)


def _pad_bias(b, out_pad):
    """(fan_out,) f32 -> zero-padded (1, out_pad) f32."""
    fo = b.shape[-1]
    return jnp.zeros((1, out_pad), jnp.float32).at[0, :fo].set(b.reshape(-1))


def prepare_params(params):
    """Hoisted (call-once) weight/bias padding + bf16 casts.

    Zero padding is numerically exact: padded bias entries are 0, LeakyReLU(0)=0,
    and padded weight rows are 0, so padded columns never contribute.
    Note w4 / b4 keep the true 480-wide output (no lane padding of the result).
    """
    (w1, b1), (w2, b2), (w3, b3), (w4, b4) = params
    return (
        _pad_weight(w1, FLAT, HIDDEN_PAD),            _pad_bias(b1, HIDDEN_PAD),
        _pad_weight(w2, HIDDEN_PAD, BOTTLENECK_PAD),  _pad_bias(b2, BOTTLENECK_PAD),
        _pad_weight(w3, BOTTLENECK_PAD, HIDDEN_PAD),  _pad_bias(b3, HIDDEN_PAD),
        _pad_weight(w4, HIDDEN_PAD, FLAT),            _pad_bias(b4, FLAT),
    )


def linear_autoencoder(src, padded_params, *, tile_b=1024):
    """src: (B, input_features, input_timepoints) float32. Returns (B, 480) float32."""
    B = src.shape[0]
    x = src.reshape(B, FLAT)  # pure reshape; bf16 cast happens inside the kernel

    # Large tiles amortize the ~0.35us/step overhead, but keep >= 2 grid steps
    # when B allows it so the "parallel" batch axis shards across v7x's 2 TCs.
    tb = max(8, min(tile_b, _round_up((B + 1) // 2, 8)))
    b_pad = _round_up(B, tb)
    if b_pad != B:
        x = jnp.pad(x, ((0, b_pad - B), (0, 0)))  # batch-dim pad only

    w1p, b1p, w2p, b2p, w3p, b3p, w4p, b4p = padded_params

    grid = (b_pad // tb,)

    def resident(shape):
        # Same block every grid step -> fetched once, stays VMEM-resident.
        return pl.BlockSpec(shape, lambda i: (0, 0))

    flops = 2 * b_pad * (FLAT * HIDDEN_PAD + HIDDEN_PAD * BOTTLENECK_PAD
                         + BOTTLENECK_PAD * HIDDEN_PAD + HIDDEN_PAD * FLAT)
    weight_bytes = 2 * (FLAT * HIDDEN_PAD + HIDDEN_PAD * BOTTLENECK_PAD
                        + BOTTLENECK_PAD * HIDDEN_PAD + HIDDEN_PAD * FLAT) \
                   + 4 * (2 * HIDDEN_PAD + BOTTLENECK_PAD + FLAT)
    bytes_accessed = (b_pad * FLAT * x.dtype.itemsize   # input read (f32)
                      + b_pad * FLAT * 4                # output write (f32, 480-wide)
                      + weight_bytes)

    f = pl.pallas_call(
        autoencoder_kernel,
        out_shape=jax.ShapeDtypeStruct((b_pad, FLAT), jnp.float32),
        grid=grid,
        in_specs=[
            pl.BlockSpec((tb, FLAT), lambda i: (i, 0)),            # x batch tile (full 480 lanes)
            resident((FLAT, HIDDEN_PAD)),        resident((1, HIDDEN_PAD)),
            resident((HIDDEN_PAD, BOTTLENECK_PAD)), resident((1, BOTTLENECK_PAD)),
            resident((BOTTLENECK_PAD, HIDDEN_PAD)), resident((1, HIDDEN_PAD)),
            resident((HIDDEN_PAD, FLAT)),        resident((1, FLAT)),
        ],
        out_specs=pl.BlockSpec((tb, FLAT), lambda i: (i, 0)),
        compiler_params=pltpu.CompilerParams(
            dimension_semantics=("parallel",)),
        cost_estimate=pl.CostEstimate(flops=flops, transcendentals=0,
                                      bytes_accessed=bytes_accessed),
    )
    out = f(x, w1p, b1p, w2p, b2p, w3p, b3p, w4p, b4p)
    # Only the (cheap) batch-dim slice remains; lane dim is already exactly 480.
    return out[:B] if b_pad != B else out


def init_params(key):
    """Deterministic init. Weights stored as (in, out); biases as (out,)."""
    def linear(key, fan_in, fan_out):
        kw, kb = jax.random.split(key)
        bound = 1.0 / jnp.sqrt(fan_in)  # matches torch.nn.Linear default scale
        w = jax.random.uniform(kw, (fan_in, fan_out), jnp.float32, -bound, bound)
        b = jax.random.uniform(kb, (fan_out,), jnp.float32, -bound, bound)
        return w, b

    k1, k2, k3, k4 = jax.random.split(key, 4)
    return (
        linear(k1, FLAT, HIDDEN),        # encoder Linear(480, 120)
        linear(k2, HIDDEN, BOTTLENECK),  # encoder Linear(120, 60)
        linear(k3, BOTTLENECK, HIDDEN),  # decoder Linear(60, 120)
        linear(k4, HIDDEN, FLAT),        # decoder Linear(120, 480)
    )


def ref_forward(src, params):
    """Plain-JAX reference mirroring the kernel's bf16-matmul / f32-accumulate math."""
    x = src.reshape(src.shape[0], -1).astype(jnp.bfloat16)
    (w1, b1), (w2, b2), (w3, b3), (w4, b4) = params

    def layer(x, w, b, act):
        y = jnp.dot(x, w.astype(jnp.bfloat16),
                    preferred_element_type=jnp.float32) + b.astype(jnp.float32)
        return _leaky_relu(y).astype(jnp.bfloat16) if act else y

    h = layer(x, w1, b1, True)
    z = layer(h, w2, b2, True)
    d = layer(z, w3, b3, True)
    return layer(d, w4, b4, False)


if __name__ == "__main__":
    key = jax.random.PRNGKey(0)
    k_params, k_x = jax.random.split(key)

    params = init_params(k_params)
    padded_params = prepare_params(params)   # hoisted out of the per-call path

    B = 2
    src = jax.random.normal(k_x, (B, INPUT_FEATURES, INPUT_TIMEPOINTS), jnp.float32)

    out = linear_autoencoder(src, padded_params)
    out = jax.block_until_ready(out)

    expected = ref_forward(src, params)
    assert out.shape == (B, FLAT)
    assert jnp.allclose(out, expected, atol=2e-3, rtol=2e-3), \
        f"max abs diff = {jnp.max(jnp.abs(out - expected))}"

    print("KERNEL_OK")
</pallas_src>

<mosaic_0001>
module attributes {stable_mosaic.version = 11 : i64} {
  func.func @autoencoder_kernel(%arg0: i32, %arg1: memref<8x480xf32, #tpu.memory_space<vmem>>, %arg2: memref<480x128xbf16, #tpu.memory_space<vmem>>, %arg3: memref<1x128xf32, #tpu.memory_space<vmem>>, %arg4: memref<128x128xbf16, #tpu.memory_space<vmem>>, %arg5: memref<1x128xf32, #tpu.memory_space<vmem>>, %arg6: memref<128x128xbf16, #tpu.memory_space<vmem>>, %arg7: memref<1x128xf32, #tpu.memory_space<vmem>>, %arg8: memref<128x480xbf16, #tpu.memory_space<vmem>>, %arg9: memref<1x480xf32, #tpu.memory_space<vmem>>, %arg10: memref<8x480xf32, #tpu.memory_space<vmem>>) attributes {dimension_semantics = [#tpu.dimension_semantics<parallel>], iteration_bounds = array<i64: 1>, scalar_prefetch = 0 : i64, scratch_operands = 0 : i64, tpu.core_type = #tpu.core_type<tc>, window_params = [{transform_indices = @transform_0, window_bounds = array<i64: 8, 480>}, {pipeline_mode = #tpu.pipeline_mode<synchronous>, transform_indices = @transform_1, window_bounds = array<i64: 480, 128>}, {pipeline_mode = #tpu.pipeline_mode<synchronous>, transform_indices = @transform_2, window_bounds = array<i64: 1, 128>}, {pipeline_mode = #tpu.pipeline_mode<synchronous>, transform_indices = @transform_3, window_bounds = array<i64: 128, 128>}, {pipeline_mode = #tpu.pipeline_mode<synchronous>, transform_indices = @transform_4, window_bounds = array<i64: 1, 128>}, {pipeline_mode = #tpu.pipeline_mode<synchronous>, transform_indices = @transform_5, window_bounds = array<i64: 128, 128>}, {pipeline_mode = #tpu.pipeline_mode<synchronous>, transform_indices = @transform_6, window_bounds = array<i64: 1, 128>}, {pipeline_mode = #tpu.pipeline_mode<synchronous>, transform_indices = @transform_7, window_bounds = array<i64: 128, 480>}, {pipeline_mode = #tpu.pipeline_mode<synchronous>, transform_indices = @transform_8, window_bounds = array<i64: 1, 480>}, {transform_indices = @transform_9, window_bounds = array<i64: 8, 480>}]} {
    %c0 = arith.constant 0 : index
    %c0_0 = arith.constant 0 : index
    %0 = vector.load %arg1[%c0, %c0_0] : memref<8x480xf32, #tpu.memory_space<vmem>>, vector<8x480xf32>
    %1 = arith.truncf %0 : vector<8x480xf32> to vector<8x480xbf16>
    %c0_1 = arith.constant 0 : index
    %c0_2 = arith.constant 0 : index
    %2 = vector.load %arg2[%c0_1, %c0_2] : memref<480x128xbf16, #tpu.memory_space<vmem>>, vector<480x128xbf16>
    %cst = arith.constant dense<0.000000e+00> : vector<8x128xf32>
    %3 = tpu.matmul %1, %2, %cst {dimension_numbers = #tpu.dot_dimension_numbers<[1], [0], [0], [1], [0, 0, 1, 1], [], []>} : vector<8x480xbf16>, vector<480x128xbf16>, vector<8x128xf32> -> vector<8x128xf32>
    %c0_3 = arith.constant 0 : index
    %c0_4 = arith.constant 0 : index
    %4 = vector.load %arg3[%c0_3, %c0_4] : memref<1x128xf32, #tpu.memory_space<vmem>>, vector<1x128xf32>
    %5 = vector.broadcast %4 : vector<1x128xf32> to vector<8x128xf32>
    %6 = arith.addf %3, %5 : vector<8x128xf32>
    %cst_5 = arith.constant 0.000000e+00 : f32
    %7 = vector.broadcast %cst_5 : f32 to vector<8x128xf32>
    %8 = arith.cmpf ogt, %6, %7 : vector<8x128xf32>
    %cst_6 = arith.constant 0.00999999977 : f32
    %9 = vector.broadcast %cst_6 : f32 to vector<8x128xf32>
    %10 = arith.mulf %9, %6 : vector<8x128xf32>
    %11 = arith.select %8, %6, %10 : vector<8x128xi1>, vector<8x128xf32>
    %12 = arith.truncf %11 : vector<8x128xf32> to vector<8x128xbf16>
    %c0_7 = arith.constant 0 : index
    %c0_8 = arith.constant 0 : index
    %13 = vector.load %arg4[%c0_7, %c0_8] : memref<128x128xbf16, #tpu.memory_space<vmem>>, vector<128x128xbf16>
    %cst_9 = arith.constant dense<0.000000e+00> : vector<8x128xf32>
    %14 = tpu.matmul %12, %13, %cst_9 {dimension_numbers = #tpu.dot_dimension_numbers<[1], [0], [0], [1], [0, 0, 1, 1], [], []>} : vector<8x128xbf16>, vector<128x128xbf16>, vector<8x128xf32> -> vector<8x128xf32>
    %c0_10 = arith.constant 0 : index
    %c0_11 = arith.constant 0 : index
    %15 = vector.load %arg5[%c0_10, %c0_11] : memref<1x128xf32, #tpu.memory_space<vmem>>, vector<1x128xf32>
    %16 = vector.broadcast %15 : vector<1x128xf32> to vector<8x128xf32>
    %17 = arith.addf %14, %16 : vector<8x128xf32>
    %cst_12 = arith.constant 0.000000e+00 : f32
    %18 = vector.broadcast %cst_12 : f32 to vector<8x128xf32>
    %19 = arith.cmpf ogt, %17, %18 : vector<8x128xf32>
    %cst_13 = arith.constant 0.00999999977 : f32
    %20 = vector.broadcast %cst_13 : f32 to vector<8x128xf32>
    %21 = arith.mulf %20, %17 : vector<8x128xf32>
    %22 = arith.select %19, %17, %21 : vector<8x128xi1>, vector<8x128xf32>
    %23 = arith.truncf %22 : vector<8x128xf32> to vector<8x128xbf16>
    %c0_14 = arith.constant 0 : index
    %c0_15 = arith.constant 0 : index
    %24 = vector.load %arg6[%c0_14, %c0_15] : memref<128x128xbf16, #tpu.memory_space<vmem>>, vector<128x128xbf16>
    %cst_16 = arith.constant dense<0.000000e+00> : vector<8x128xf32>
    %25 = tpu.matmul %23, %24, %cst_16 {dimension_numbers = #tpu.dot_dimension_numbers<[1], [0], [0], [1], [0, 0, 1, 1], [], []>} : vector<8x128xbf16>, vector<128x128xbf16>, vector<8x128xf32> -> vector<8x128xf32>
    %c0_17 = arith.constant 0 : index
    %c0_18 = arith.constant 0 : index
    %26 = vector.load %arg7[%c0_17, %c0_18] : memref<1x128xf32, #tpu.memory_space<vmem>>, vector<1x128xf32>
    %27 = vector.broadcast %26 : vector<1x128xf32> to vector<8x128xf32>
    %28 = arith.addf %25, %27 : vector<8x128xf32>
    %cst_19 = arith.constant 0.000000e+00 : f32
    %29 = vector.broadcast %cst_19 : f32 to vector<8x128xf32>
    %30 = arith.cmpf ogt, %28, %29 : vector<8x128xf32>
    %cst_20 = arith.constant 0.00999999977 : f32
    %31 = vector.broadcast %cst_20 : f32 to vector<8x128xf32>
    %32 = arith.mulf %31, %28 : vector<8x128xf32>
    %33 = arith.select %30, %28, %32 : vector<8x128xi1>, vector<8x128xf32>
    %34 = arith.truncf %33 : vector<8x128xf32> to vector<8x128xbf16>
    %c0_21 = arith.constant 0 : index
    %c0_22 = arith.constant 0 : index
    %35 = vector.load %arg8[%c0_21, %c0_22] : memref<128x480xbf16, #tpu.memory_space<vmem>>, vector<128x480xbf16>
    %cst_23 = arith.constant dense<0.000000e+00> : vector<8x480xf32>
    %36 = tpu.matmul %34, %35, %cst_23 {dimension_numbers = #tpu.dot_dimension_numbers<[1], [0], [0], [1], [0, 0, 1, 1], [], []>} : vector<8x128xbf16>, vector<128x480xbf16>, vector<8x480xf32> -> vector<8x480xf32>
    %c0_24 = arith.constant 0 : index
    %c0_25 = arith.constant 0 : index
    %37 = vector.load %arg9[%c0_24, %c0_25] : memref<1x480xf32, #tpu.memory_space<vmem>>, vector<1x480xf32>
    %38 = vector.broadcast %37 : vector<1x480xf32> to vector<8x480xf32>
    %39 = arith.addf %36, %38 : vector<8x480xf32>
    %c0_26 = arith.constant 0 : index
    %c0_27 = arith.constant 0 : index
    %40 = vector.load %arg10[%c0_26, %c0_27] : memref<8x480xf32, #tpu.memory_space<vmem>>, vector<8x480xf32>
    tpu.vector_store %arg10[%c0_26, %c0_27], %39 {strides = array<i32>} : memref<8x480xf32, #tpu.memory_space<vmem>>, vector<8x480xf32>,
    return
  }
  func.func @transform_0(%arg0: i32) -> (i32, i32) {
    %c0_i32 = arith.constant 0 : i32
    %c0_i32_0 = arith.constant 0 : i32
    return %arg0, %c0_i32 : i32, i32
  }
  func.func @transform_1(%arg0: i32) -> (i32, i32) {
    %c0_i32 = arith.constant 0 : i32
    %c0_i32_0 = arith.constant 0 : i32
    %c0_i32_1 = arith.constant 0 : i32
    return %c0_i32, %c0_i32_0 : i32, i32
  }
  func.func @transform_2(%arg0: i32) -> (i32, i32) {
    %c0_i32 = arith.constant 0 : i32
    %c0_i32_0 = arith.constant 0 : i32
    %c0_i32_1 = arith.constant 0 : i32
    return %c0_i32, %c0_i32_0 : i32, i32
  }
  func.func @transform_3(%arg0: i32) -> (i32, i32) {
    %c0_i32 = arith.constant 0 : i32
    %c0_i32_0 = arith.constant 0 : i32
    %c0_i32_1 = arith.constant 0 : i32
    return %c0_i32, %c0_i32_0 : i32, i32
  }
  func.func @transform_4(%arg0: i32) -> (i32, i32) {
    %c0_i32 = arith.constant 0 : i32
    %c0_i32_0 = arith.constant 0 : i32
    %c0_i32_1 = arith.constant 0 : i32
    return %c0_i32, %c0_i32_0 : i32, i32
  }
  func.func @transform_5(%arg0: i32) -> (i32, i32) {
    %c0_i32 = arith.constant 0 : i32
    %c0_i32_0 = arith.constant 0 : i32
    %c0_i32_1 = arith.constant 0 : i32
    return %c0_i32, %c0_i32_0 : i32, i32
  }
  func.func @transform_6(%arg0: i32) -> (i32, i32) {
    %c0_i32 = arith.constant 0 : i32
    %c0_i32_0 = arith.constant 0 : i32
    %c0_i32_1 = arith.constant 0 : i32
    return %c0_i32, %c0_i32_0 : i32, i32
  }
  func.func @transform_7(%arg0: i32) -> (i32, i32) {
    %c0_i32 = arith.constant 0 : i32
    %c0_i32_0 = arith.constant 0 : i32
    %c0_i32_1 = arith.constant 0 : i32
    return %c0_i32, %c0_i32_0 : i32, i32
  }
  func.func @transform_8(%arg0: i32) -> (i32, i32) {
    %c0_i32 = arith.constant 0 : i32
    %c0_i32_0 = arith.constant 0 : i32
    %c0_i32_1 = arith.constant 0 : i32
    return %c0_i32, %c0_i32_0 : i32, i32
  }
  func.func @transform_9(%arg0: i32) -> (i32, i32) {
    %c0_i32 = arith.constant 0 : i32
    %c0_i32_0 = arith.constant 0 : i32
    return %arg0, %c0_i32 : i32, i32
  }
}

</mosaic_0001>

<llo_original>
// kernel: tpu_custom_call.1
$region0: #{tpu_custom_call.1}
  #allocation0 [shape = 'u32[]', space=smem, size = 0x4, offset = 0x4, fixed_abs, tag = 'smem constant byte address 0x4 - core index']
  #allocation1 [shape = 'u32[144,128]{1,0:T(1,128)}', space=vmem, size = 0x12000, scoped, tag = 'internal scratch']
  %s0 = inlined_call_operand.vmem [shape: f32[8,480], index: 0, kind: input, shape index: {}]
  %s1 = inlined_call_operand.vmem [shape: bf16[480,128], index: 1, kind: input, shape index: {}]
  %s2 = inlined_call_operand.vmem [shape: f32[1,128], index: 2, kind: input, shape index: {}]
  %s3 = inlined_call_operand.vmem [shape: bf16[128,128], index: 3, kind: input, shape index: {}]
  %s4 = inlined_call_operand.vmem [shape: f32[1,128], index: 4, kind: input, shape index: {}]
  %s5 = inlined_call_operand.vmem [shape: bf16[128,128], index: 5, kind: input, shape index: {}]
  %s6 = inlined_call_operand.vmem [shape: f32[1,128], index: 6, kind: input, shape index: {}]
  %s7 = inlined_call_operand.vmem [shape: bf16[128,480], index: 7, kind: input, shape index: {}]
  %s8 = inlined_call_operand.vmem [shape: f32[1,480], index: 8, kind: input, shape index: {}]
  %s9 = inlined_call_operand.hbm [shape: f32[8,480], index: 9, kind: output, shape index: {}]
  %s10 = sld [smem:[#allocation0]]
  $region46: #{tpu_custom_call.1} parent=0
    _
  %s12 = ssub.s32 1, %s10
  %s13 = scalar_select 0, %s12, %s10
  $region1: #{tpu_custom_call.1} parent=0
    #allocation2 [shape = 'u8[16384]{0}', space=vmem, size = 0x4000, scoped, tag = 'output window, operand 0, single buffered']
    #allocation3 [shape = 's32[1]{0}', space=sflag, size = 0x4, scoped, tag = 'scoped memory for tpu_custom_call.1']
    %14 = vsyncpa [#allocation3], 0
    // Predicated region
    $region2: #{tpu_custom_call.1} parent=1 // pred_check
      _
    $region3: #{tpu_custom_call.1} parent=1 // pred_check_branch
      %16 = sbr.rel (0) target = $region5
    $region4: #{tpu_custom_call.1} parent=1 // pred_region
      _
    $region5: #{tpu_custom_call.1} parent=1 // pred_fallthru
      _
    // Predicated region
    $region6: #{tpu_custom_call.1} parent=1 // pred_check
      _
    $region7: #{tpu_custom_call.1} parent=1 // pred_check_branch
      %18 = sbr.rel (0) target = $region9
    $region8: #{tpu_custom_call.1} parent=1 // pred_region
      _
    $region9: #{tpu_custom_call.1} parent=1 // pred_fallthru
      _
    // Predicated region
    $region10: #{tpu_custom_call.1} parent=1 // pred_check
      _
    $region11: #{tpu_custom_call.1} parent=1 // pred_check_branch
      %20 = sbr.rel (0) target = $region13
    $region12: #{tpu_custom_call.1} parent=1 // pred_region
      _
    $region13: #{tpu_custom_call.1} parent=1 // pred_fallthru
      _
    // Predicated region
    $region14: #{tpu_custom_call.1} parent=1 // pred_check
      _
    $region15: #{tpu_custom_call.1} parent=1 // pred_check_branch
      %22 = sbr.rel (0) target = $region17
    $region16: #{tpu_custom_call.1} parent=1 // pred_region
      _
    $region17: #{tpu_custom_call.1} parent=1 // pred_fallthru
      _
    // Predicated region
    $region18: #{tpu_custom_call.1} parent=1 // pred_check
      _
    $region19: #{tpu_custom_call.1} parent=1 // pred_check_branch
      %24 = sbr.rel (0) target = $region21
    $region20: #{tpu_custom_call.1} parent=1 // pred_region
      _
    $region21: #{tpu_custom_call.1} parent=1 // pred_fallthru
      _
    // Predicated region
    $region22: #{tpu_custom_call.1} parent=1 // pred_check
      _
    $region23: #{tpu_custom_call.1} parent=1 // pred_check_branch
      %26 = sbr.rel (0) target = $region25
    $region24: #{tpu_custom_call.1} parent=1 // pred_region
      _
    $region25: #{tpu_custom_call.1} parent=1 // pred_fallthru
      _
    // Predicated region
    $region26: #{tpu_custom_call.1} parent=1 // pred_check
      _
    $region27: #{tpu_custom_call.1} parent=1 // pred_check_branch
      %28 = sbr.rel (0) target = $region29
    $region28: #{tpu_custom_call.1} parent=1 // pred_region
      _
    $region29: #{tpu_custom_call.1} parent=1 // pred_fallthru
      _
    // Predicated region
    $region30: #{tpu_custom_call.1} parent=1 // pred_check
      _
    $region31: #{tpu_custom_call.1} parent=1 // pred_check_branch
      %30 = sbr.rel (0) target = $region33
    $region32: #{tpu_custom_call.1} parent=1 // pred_region
      _
    $region33: #{tpu_custom_call.1} parent=1 // pred_fallthru
      _
    // Predicated region
    $region34: #{tpu_custom_call.1} parent=1 // pred_check
      _
    $region35: #{tpu_custom_call.1} parent=1 // pred_check_branch
      %32 = sbr.rel (0) target = $region37
    $region36: #{tpu_custom_call.1} parent=1 // pred_region
      _
    $region37: #{tpu_custom_call.1} parent=1 // pred_fallthru
      _
    %v34 = vld [vmem:[%s0] sm:$0xff]
    %v35 = vld [vmem:[%s0 + $0x8] sm:$0xff]
    %v36 = vld [vmem:[%s0 + $0x10] sm:$0xff]
    %v37 = vld [vmem:[%s0 + $0x18] sm:$0xff]
    %v38 = vpack.c.bf16 %v34, %v34
    %v39 = vpack.c.bf16 %v35, %v35
    %v40 = vpack.c.bf16 %v36, %v36
    %v41 = vpack.c.bf16 %v37, %v37
    %v42 = vld [vmem:[%s1] sm:$0xf]
    %v43 = vld [vmem:[%s1 + $0x4] sm:$0xf]
    %v44 = vld [vmem:[%s1 + $0x8] sm:$0xf]
    %v45 = vld [vmem:[%s1 + $0xc] sm:$0xf]
    %v46 = vld [vmem:[%s1 + $0x10] sm:$0xf]
    %v47 = vld [vmem:[%s1 + $0x14] sm:$0xf]
    %v48 = vld [vmem:[%s1 + $0x18] sm:$0xf]
    %v49 = vld [vmem:[%s1 + $0x1c] sm:$0xf]
    %v50 = vld [vmem:[%s1 + $0x20] sm:$0xf]
    %v51 = vld [vmem:[%s1 + $0x24] sm:$0xf]
    %v52 = vld [vmem:[%s1 + $0x28] sm:$0xf]
    %v53 = vld [vmem:[%s1 + $0x2c] sm:$0xf]
    %v54 = vld [vmem:[%s1 + $0x30] sm:$0xf]
    %v55 = vld [vmem:[%s1 + $0x34] sm:$0xf]
    %v56 = vld [vmem:[%s1 + $0x38] sm:$0xf]
    %v57 = vld [vmem:[%s1 + $0x3c] sm:$0xf]
    %v58 = vld [vmem:[%s1 + $0x40] sm:$0xf]
    %v59 = vld [vmem:[%s1 + $0x44] sm:$0xf]
    %v60 = vld [vmem:[%s1 + $0x48] sm:$0xf]
    %v61 = vld [vmem:[%s1 + $0x4c] sm:$0xf]
    %v62 = vld [vmem:[%s1 + $0x50] sm:$0xf]
    %v63 = vld [vmem:[%s1 + $0x54] sm:$0xf]
    %v64 = vld [vmem:[%s1 + $0x58] sm:$0xf]
    %v65 = vld [vmem:[%s1 + $0x5c] sm:$0xf]
    %v66 = vld [vmem:[%s1 + $0x60] sm:$0xf]
    %v67 = vld [vmem:[%s1 + $0x64] sm:$0xf]
    %v68 = vld [vmem:[%s1 + $0x68] sm:$0xf]
    %v69 = vld [vmem:[%s1 + $0x6c] sm:$0xf]
    %v70 = vld [vmem:[%s1 + $0x70] sm:$0xf]
    %v71 = vld [vmem:[%s1 + $0x74] sm:$0xf]
    %v72 = vld [vmem:[%s1 + $0x78] sm:$0xf]
    %v73 = vld [vmem:[%s1 + $0x7c] sm:$0xf]
    %v74 = vld [vmem:[%s1 + $0x80] sm:$0xf]
    %v75 = vld [vmem:[%s1 + $0x84] sm:$0xf]
    %v76 = vld [vmem:[%s1 + $0x88] sm:$0xf]
    %v77 = vld [vmem:[%s1 + $0x8c] sm:$0xf]
    %v78 = vld [vmem:[%s1 + $0x90] sm:$0xf]
    %v79 = vld [vmem:[%s1 + $0x94] sm:$0xf]
    %v80 = vld [vmem:[%s1 + $0x98] sm:$0xf]
    %v81 = vld [vmem:[%s1 + $0x9c] sm:$0xf]
    %v82 = vld [vmem:[%s1 + $0xa0] sm:$0xf]
    %v83 = vld [vmem:[%s1 + $0xa4] sm:$0xf]
    %v84 = vld [vmem:[%s1 + $0xa8] sm:$0xf]
    %v85 = vld [vmem:[%s1 + $0xac] sm:$0xf]
    %v86 = vld [vmem:[%s1 + $0xb0] sm:$0xf]
    %v87 = vld [vmem:[%s1 + $0xb4] sm:$0xf]
    %v88 = vld [vmem:[%s1 + $0xb8] sm:$0xf]
    %v89 = vld [vmem:[%s1 + $0xbc] sm:$0xf]
    %v90 = vld [vmem:[%s1 + $0xc0] sm:$0xf]
    %v91 = vld [vmem:[%s1 + $0xc4] sm:$0xf]
    %v92 = vld [vmem:[%s1 + $0xc8] sm:$0xf]
    %v93 = vld [vmem:[%s1 + $0xcc] sm:$0xf]
    %v94 = vld [vmem:[%s1 + $0xd0] sm:$0xf]
    %v95 = vld [vmem:[%s1 + $0xd4] sm:$0xf]
    %v96 = vld [vmem:[%s1 + $0xd8] sm:$0xf]
    %v97 = vld [vmem:[%s1 + $0xdc] sm:$0xf]
    %v98 = vld [vmem:[%s1 + $0xe0] sm:$0xf]
    %v99 = vld [vmem:[%s1 + $0xe4] sm:$0xf]
    %v100 = vld [vmem:[%s1 + $0xe8] sm:$0xf]
    %v101 = vld [vmem:[%s1 + $0xec] sm:$0xf]
    %v102 = vld [vmem:[%s2] sm:$0x1]
    %v104 = vlaneseq
    %v105 = vshrl.u32 %v104, 7
    %v106 = vsub.s32 0, %v105
    %v107 = vrot.slane %v102, %v106
    %v169 = vunpack.c.l.b16 %v42
    %v170 = vunpack.c.l.b16 %v43
    %v171 = vunpack.c.l.b16 %v44
    %v172 = vunpack.c.l.b16 %v45
    %v173 = vunpack.c.l.b16 %v46
    %v174 = vunpack.c.l.b16 %v47
    %v175 = vunpack.c.l.b16 %v48
    %v176 = vunpack.c.l.b16 %v49
    %v177 = vunpack.c.l.b16 %v50
    %v178 = vunpack.c.l.b16 %v51
    %v179 = vunpack.c.l.b16 %v52
    %v180 = vunpack.c.l.b16 %v53
    %v181 = vunpack.c.l.b16 %v54
    %v182 = vunpack.c.l.b16 %v55
    %v183 = vunpack.c.l.b16 %v56
    %v184 = vunpack.c.l.b16 %v57
    %v185 = vunpack.c.l.b16 %v58
    %v186 = vunpack.c.l.b16 %v59
    %v187 = vunpack.c.l.b16 %v60
    %v188 = vunpack.c.l.b16 %v61
    %v189 = vunpack.c.l.b16 %v62
    %v190 = vunpack.c.l.b16 %v63
    %v191 = vunpack.c.l.b16 %v64
    %v192 = vunpack.c.l.b16 %v65
    %v193 = vunpack.c.l.b16 %v66
    %v194 = vunpack.c.l.b16 %v67
    %v195 = vunpack.c.l.b16 %v68
    %v196 = vunpack.c.l.b16 %v69
    %v197 = vunpack.c.l.b16 %v70
    %v198 = vunpack.c.l.b16 %v71
    %v199 = vunpack.c.l.b16 %v72
    %v200 = vunpack.c.l.b16 %v73
    %v201 = vunpack.c.l.b16 %v74
    %v202 = vunpack.c.l.b16 %v75
    %v203 = vunpack.c.l.b16 %v76
    %v204 = vunpack.c.l.b16 %v77
    %v205 = vunpack.c.l.b16 %v78
    %v206 = vunpack.c.l.b16 %v79
    %v207 = vunpack.c.l.b16 %v80
    %v208 = vunpack.c.l.b16 %v81
    %v209 = vunpack.c.l.b16 %v82
    %v210 = vunpack.c.l.b16 %v83
    %v211 = vunpack.c.l.b16 %v84
    %v212 = vunpack.c.l.b16 %v85
    %v213 = vunpack.c.l.b16 %v86
    %v214 = vunpack.c.l.b16 %v87
    %v215 = vunpack.c.l.b16 %v88
    %v216 = vunpack.c.l.b16 %v89
    %v217 = vunpack.c.l.b16 %v90
    %v218 = vunpack.c.l.b16 %v91
    %v219 = vunpack.c.l.b16 %v92
    %v220 = vunpack.c.l.b16 %v93
    %v221 = vunpack.c.l.b16 %v94
    %v222 = vunpack.c.l.b16 %v95
    %v223 = vunpack.c.l.b16 %v96
    %v224 = vunpack.c.l.b16 %v97
    %v225 = vunpack.c.l.b16 %v98
    %v226 = vunpack.c.l.b16 %v99
    %v227 = vunpack.c.l.b16 %v100
    %v228 = vunpack.c.l.b16 %v101
    %v229 = vpack.c.b16 %v170, %v169
    %v230 = vpack.c.b16 %v172, %v171
    %v231 = vpack.c.b16 %v174, %v173
    %v232 = vpack.c.b16 %v176, %v175
    %v233 = vpack.c.b16 %v178, %v177
    %v234 = vpack.c.b16 %v180, %v179
    %v235 = vpack.c.b16 %v182, %v181
    %v236 = vpack.c.b16 %v184, %v183
    %v237 = vpack.c.b16 %v186, %v185
    %v238 = vpack.c.b16 %v188, %v187
    %v239 = vpack.c.b16 %v190, %v189
    %v240 = vpack.c.b16 %v192, %v191
    %v241 = vpack.c.b16 %v194, %v193
    %v242 = vpack.c.b16 %v196, %v195
    %v243 = vpack.c.b16 %v198, %v197
    %v244 = vpack.c.b16 %v200, %v199
    %v245 = vpack.c.b16 %v202, %v201
    %v246 = vpack.c.b16 %v204, %v203
    %v247 = vpack.c.b16 %v206, %v205
    %v248 = vpack.c.b16 %v208, %v207
    %v249 = vpack.c.b16 %v210, %v209
    %v250 = vpack.c.b16 %v212, %v211
    %v251 = vpack.c.b16 %v214, %v213
    %v252 = vpack.c.b16 %v216, %v215
    %v253 = vpack.c.b16 %v218, %v217
    %v254 = vpack.c.b16 %v220, %v219
    %v255 = vpack.c.b16 %v222, %v221
    %v256 = vpack.c.b16 %v224, %v223
    %v257 = vpack.c.b16 %v226, %v225
    %v258 = vpack.c.b16 %v228, %v227
    %vm289 = vcmask 785408
    %v291 = vsel %vm289, %v41, 0
    %293 = vmatprep.subr.bf16.mxu0 0
    %294 = vmatpush1.bf16.msra.mxu0 %v229
    %295 = vmatprep.subr.bf16.mxu0 0
    %296 = vmatpush1.bf16.msra.mxu0 %v230
    %297 = vmatprep.subr.bf16.mxu0 0
    %298 = vmatpush1.bf16.msra.mxu0 %v231
    %299 = vmatprep.subr.bf16.mxu0 0
    %300 = vmatpush1.bf16.msra.mxu0 %v232
    %301 = vmatprep.subr.bf16.mxu0 0
    %302 = vmatpush1.bf16.msra.mxu0 %v233
    %303 = vmatprep.subr.bf16.mxu0 0
    %304 = vmatpush1.bf16.msra.mxu0 %v234
    %305 = vmatprep.subr.bf16.mxu0 0
    %306 = vmatpush1.bf16.msra.mxu0 %v235
    %307 = vmatprep.subr.bf16.mxu0 0
    %308 = vmatpush1.bf16.msra.mxu0 %v236
    %309 = vmatprep.subr.bf16.mxu0 0
    %310 = vmatpush1.bf16.msra.mxu0 %v237
    %311 = vmatprep.subr.bf16.mxu0 0
    %312 = vmatpush1.bf16.msra.mxu0 %v238
    %313 = vmatprep.subr.bf16.mxu0 0
    %314 = vmatpush1.bf16.msra.mxu0 %v239
    %315 = vmatprep.subr.bf16.mxu0 0
    %316 = vmatpush1.bf16.msra.mxu0 %v240
    %317 = vmatprep.subr.bf16.mxu0 0
    %318 = vmatpush1.bf16.msra.mxu0 %v241
    %319 = vmatprep.subr.bf16.mxu0 0
    %320 = vmatpush1.bf16.msra.mxu0 %v242
    %321 = vmatprep.subr.bf16.mxu0 0
    %322 = vmatpush1.bf16.msra.mxu0 %v243
    %323 = vmatprep.subr.bf16.mxu0 0
    %324 = vmatpush1.bf16.msra.mxu0 %v244
    %325 = vmatprep.mubr.bf16.mxu0 %v39
    %326 = vmatmul.mubr.bf16.gmra.mrb[0].mxu0 %v38
    %v327 = vpop.f32.mrb[0].mxu0
    %v328 = vadd.f32 %v107, %v327
    %v329 = vpop.f32.mrb[0].mxu0
    %v330 = vpop.f32.mrb[0].mxu0
    %v331 = vpop.f32.mrb[0].mxu0
    %332 = vdwg.mxu0
    %333 = vmatprep.subr.bf16.mxu0 0
    %334 = vmatpush1.bf16.msra.mxu0 %v245
    %335 = vmatprep.subr.bf16.mxu0 0
    %336 = vmatpush1.bf16.msra.mxu0 %v246
    %337 = vmatprep.subr.bf16.mxu0 0
    %338 = vmatpush1.bf16.msra.mxu0 %v247
    %339 = vmatprep.subr.bf16.mxu0 0
    %340 = vmatpush1.bf16.msra.mxu0 %v248
    %341 = vmatprep.subr.bf16.mxu0 0
    %342 = vmatpush1.bf16.msra.mxu0 %v249
    %343 = vmatprep.subr.bf16.mxu0 0
    %344 = vmatpush1.bf16.msra.mxu0 %v250
    %345 = vmatprep.subr.bf16.mxu0 0
    %346 = vmatpush1.bf16.msra.mxu0 %v251
    %347 = vmatprep.subr.bf16.mxu0 0
    %348 = vmatpush1.bf16.msra.mxu0 %v252
    %349 = vmatprep.subr.bf16.mxu0 0
    %350 = vmatpush1.bf16.msra.mxu0 %v253
    %351 = vmatprep.subr.bf16.mxu0 0
    %352 = vmatpush1.bf16.msra.mxu0 %v254
    %353 = vmatprep.subr.bf16.mxu0 0
    %354 = vmatpush1.bf16.msra.mxu0 %v255
    %355 = vmatprep.subr.bf16.mxu0 0
    %356 = vmatpush1.bf16.msra.mxu0 %v256
    %357 = vmatprep.subr.bf16.mxu0 0
    %358 = vmatpush1.bf16.msra.mxu0 %v257
    %359 = vmatprep.subr.bf16.mxu0 0
    %360 = vmatpush1.bf16.msra.mxu0 %v258
    %361 = vmatprep.subr.bf16.mxu0 0
    %362 = vmatpush1.bf16.msra.mxu0 0
    %363 = vmatprep.subr.bf16.mxu0 0
    %364 = vmatpush1.bf16.msra.mxu0 0
    %365 = vmatprep.mubr.bf16.mxu0 %v291
    %366 = vmatmul.mubr.bf16.gmra.mrb[0].mxu0 %v40
    %v367 = vpop.f32.mrb[0].mxu0
    %v368 = vadd.f32 %v328, %v367
    %v369 = vpop.f32.mrb[0].mxu0
    %v370 = vpop.f32.mrb[0].mxu0
    %v371 = vpop.f32.mrb[0].mxu0
    %372 = vdwg.mxu0
    %vm373 = vcmp.gt.f32.partialorder %v368, 0.0
    %v374 = vmul.f32 %v368, 0.01
    %v375 = vsel %vm373, %v368, %v374
    %v376 = vpack.c.bf16 %v375, %v375
    %v377 = vld [vmem:[%s3] sm:$0xf]
    %v378 = vld [vmem:[%s3 + $0x4] sm:$0xf]
    %v379 = vld [vmem:[%s3 + $0x8] sm:$0xf]
    %v380 = vld [vmem:[%s3 + $0xc] sm:$0xf]
    %v381 = vld [vmem:[%s3 + $0x10] sm:$0xf]
    %v382 = vld [vmem:[%s3 + $0x14] sm:$0xf]
    %v383 = vld [vmem:[%s3 + $0x18] sm:$0xf]
    %v384 = vld [vmem:[%s3 + $0x1c] sm:$0xf]
    %v385 = vld [vmem:[%s3 + $0x20] sm:$0xf]
    %v386 = vld [vmem:[%s3 + $0x24] sm:$0xf]
    %v387 = vld [vmem:[%s3 + $0x28] sm:$0xf]
    %v388 = vld [vmem:[%s3 + $0x2c] sm:$0xf]
    %v389 = vld [vmem:[%s3 + $0x30] sm:$0xf]
    %v390 = vld [vmem:[%s3 + $0x34] sm:$0xf]
    %v391 = vld [vmem:[%s3 + $0x38] sm:$0xf]
    %v392 = vld [vmem:[%s3 + $0x3c] sm:$0xf]
    %v393 = vld [vmem:[%s4] sm:$0x1]
    %v395 = vlaneseq
    %v396 = vshrl.u32 %v395, 7
    %v397 = vsub.s32 0, %v396
    %v398 = vrot.slane %v393, %v397
    %v416 = vunpack.c.l.b16 %v377
    %v417 = vunpack.c.l.b16 %v378
    %v418 = vunpack.c.l.b16 %v379
    %v419 = vunpack.c.l.b16 %v380
    %v420 = vunpack.c.l.b16 %v381
    %v421 = vunpack.c.l.b16 %v382
    %v422 = vunpack.c.l.b16 %v383
    %v423 = vunpack.c.l.b16 %v384
    %v424 = vunpack.c.l.b16 %v385
    %v425 = vunpack.c.l.b16 %v386
    %v426 = vunpack.c.l.b16 %v387
    %v427 = vunpack.c.l.b16 %v388
    %v428 = vunpack.c.l.b16 %v389
    %v429 = vunpack.c.l.b16 %v390
    %v430 = vunpack.c.l.b16 %v391
    %v431 = vunpack.c.l.b16 %v392
    %v432 = vpack.c.b16 %v417, %v416
    %v433 = vpack.c.b16 %v419, %v418
    %v434 = vpack.c.b16 %v421, %v420
    %v435 = vpack.c.b16 %v423, %v422
    %v436 = vpack.c.b16 %v425, %v424
    %v437 = vpack.c.b16 %v427, %v426
    %v438 = vpack.c.b16 %v429, %v428
    %v439 = vpack.c.b16 %v431, %v430
    %448 = vmatprep.subr.bf16.mxu0 0
    %449 = vmatpush1.bf16.msra.mxu0 %v432
    %450 = vmatprep.subr.bf16.mxu0 0
    %451 = vmatpush1.bf16.msra.mxu0 %v433
    %452 = vmatprep.subr.bf16.mxu0 0
    %453 = vmatpush1.bf16.msra.mxu0 %v434
    %454 = vmatprep.subr.bf16.mxu0 0
    %455 = vmatpush1.bf16.msra.mxu0 %v435
    %456 = vmatprep.subr.bf16.mxu0 0
    %457 = vmatpush1.bf16.msra.mxu0 %v436
    %458 = vmatprep.subr.bf16.mxu0 0
    %459 = vmatpush1.bf16.msra.mxu0 %v437
    %460 = vmatprep.subr.bf16.mxu0 0
    %461 = vmatpush1.bf16.msra.mxu0 %v438
    %462 = vmatprep.subr.bf16.mxu0 0
    %463 = vmatpush1.bf16.msra.mxu0 %v439
    %464 = vmatprep.subr.bf16.mxu0 0
    %465 = vmatpush1.bf16.msra.mxu0 0
    %466 = vmatprep.subr.bf16.mxu0 0
    %467 = vmatpush1.bf16.msra.mxu0 0
    %468 = vmatprep.subr.bf16.mxu0 0
    %469 = vmatpush1.bf16.msra.mxu0 0
    %470 = vmatprep.subr.bf16.mxu0 0
    %471 = vmatpush1.bf16.msra.mxu0 0
    %472 = vmatprep.subr.bf16.mxu0 0
    %473 = vmatpush1.bf16.msra.mxu0 0
    %474 = vmatprep.subr.bf16.mxu0 0
    %475 = vmatpush1.bf16.msra.mxu0 0
    %476 = vmatprep.subr.bf16.mxu0 0
    %477 = vmatpush1.bf16.msra.mxu0 0
    %478 = vmatprep.subr.bf16.mxu0 0
    %479 = vmatpush1.bf16.msra.mxu0 0
    %480 = vmatprep.mubr.bf16.mxu0 0
    %481 = vmatmul.mubr.bf16.gmra.mrb[0].mxu0 %v376
    %v482 = vpop.f32.mrb[0].mxu0
    %v483 = vadd.f32 %v398, %v482
    %v484 = vpop.f32.mrb[0].mxu0
    %v485 = vpop.f32.mrb[0].mxu0
    %v486 = vpop.f32.mrb[0].mxu0
    %487 = vdwg.mxu0
    %vm488 = vcmp.gt.f32.partialorder %v483, 0.0
    %v489 = vmul.f32 %v483, 0.01
    %v490 = vsel %vm488, %v483, %v489
    %v491 = vpack.c.bf16 %v490, %v490
    %v492 = vld [vmem:[%s5] sm:$0xf]
    %v493 = vld [vmem:[%s5 + $0x4] sm:$0xf]
    %v494 = vld [vmem:[%s5 + $0x8] sm:$0xf]
    %v495 = vld [vmem:[%s5 + $0xc] sm:$0xf]
    %v496 = vld [vmem:[%s5 + $0x10] sm:$0xf]
    %v497 = vld [vmem:[%s5 + $0x14] sm:$0xf]
    %v498 = vld [vmem:[%s5 + $0x18] sm:$0xf]
    %v499 = vld [vmem:[%s5 + $0x1c] sm:$0xf]
    %v500 = vld [vmem:[%s5 + $0x20] sm:$0xf]
    %v501 = vld [vmem:[%s5 + $0x24] sm:$0xf]
    %v502 = vld [vmem:[%s5 + $0x28] sm:$0xf]
    %v503 = vld [vmem:[%s5 + $0x2c] sm:$0xf]
    %v504 = vld [vmem:[%s5 + $0x30] sm:$0xf]
    %v505 = vld [vmem:[%s5 + $0x34] sm:$0xf]
    %v506 = vld [vmem:[%s5 + $0x38] sm:$0xf]
    %v507 = vld [vmem:[%s5 + $0x3c] sm:$0xf]
    %v508 = vld [vmem:[%s6] sm:$0x1]
    %v510 = vlaneseq
    %v511 = vshrl.u32 %v510, 7
    %v512 = vsub.s32 0, %v511
    %v513 = vrot.slane %v508, %v512
    %v531 = vunpack.c.l.b16 %v492
    %v532 = vunpack.c.l.b16 %v493
    %v533 = vunpack.c.l.b16 %v494
    %v534 = vunpack.c.l.b16 %v495
    %v535 = vunpack.c.l.b16 %v496
    %v536 = vunpack.c.l.b16 %v497
    %v537 = vunpack.c.l.b16 %v498
    %v538 = vunpack.c.l.b16 %v499
    %v539 = vunpack.c.l.b16 %v500
    %v540 = vunpack.c.l.b16 %v501
    %v541 = vunpack.c.l.b16 %v502
    %v542 = vunpack.c.l.b16 %v503
    %v543 = vunpack.c.l.b16 %v504
    %v544 = vunpack.c.l.b16 %v505
    %v545 = vunpack.c.l.b16 %v506
    %v546 = vunpack.c.l.b16 %v507
    %v547 = vpack.c.b16 %v532, %v531
    %v548 = vpack.c.b16 %v534, %v533
    %v549 = vpack.c.b16 %v536, %v535
    %v550 = vpack.c.b16 %v538, %v537
    %v551 = vpack.c.b16 %v540, %v539
    %v552 = vpack.c.b16 %v542, %v541
    %v553 = vpack.c.b16 %v544, %v543
    %v554 = vpack.c.b16 %v546, %v545
    %563 = vmatprep.subr.bf16.mxu0 0
    %564 = vmatpush1.bf16.msra.mxu0 %v547
    %565 = vmatprep.subr.bf16.mxu0 0
    %566 = vmatpush1.bf16.msra.mxu0 %v548
    %567 = vmatprep.subr.bf16.mxu0 0
    %568 = vmatpush1.bf16.msra.mxu0 %v549
    %569 = vmatprep.subr.bf16.mxu0 0
    %570 = vmatpush1.bf16.msra.mxu0 %v550
    %571 = vmatprep.subr.bf16.mxu0 0
    %572 = vmatpush1.bf16.msra.mxu0 %v551
    %573 = vmatprep.subr.bf16.mxu0 0
    %574 = vmatpush1.bf16.msra.mxu0 %v552
    %575 = vmatprep.subr.bf16.mxu0 0
    %576 = vmatpush1.bf16.msra.mxu0 %v553
    %577 = vmatprep.subr.bf16.mxu0 0
    %578 = vmatpush1.bf16.msra.mxu0 %v554
    %579 = vmatprep.subr.bf16.mxu0 0
    %580 = vmatpush1.bf16.msra.mxu0 0
    %581 = vmatprep.subr.bf16.mxu0 0
    %582 = vmatpush1.bf16.msra.mxu0 0
    %583 = vmatprep.subr.bf16.mxu0 0
    %584 = vmatpush1.bf16.msra.mxu0 0
    %585 = vmatprep.subr.bf16.mxu0 0
    %586 = vmatpush1.bf16.msra.mxu0 0
    %587 = vmatprep.subr.bf16.mxu0 0
    %588 = vmatpush1.bf16.msra.mxu0 0
    %589 = vmatprep.subr.bf16.mxu0 0
    %590 = vmatpush1.bf16.msra.mxu0 0
    %591 = vmatprep.subr.bf16.mxu0 0
    %592 = vmatpush1.bf16.msra.mxu0 0
    %593 = vmatprep.subr.bf16.mxu0 0
    %594 = vmatpush1.bf16.msra.mxu0 0
    %595 = vmatprep.mubr.bf16.mxu0 0
    %596 = vmatmul.mubr.bf16.gmra.mrb[0].mxu0 %v491
    %v597 = vpop.f32.mrb[0].mxu0
    %v598 = vadd.f32 %v513, %v597
    %v599 = vpop.f32.mrb[0].mxu0
    %v600 = vpop.f32.mrb[0].mxu0
    %v601 = vpop.f32.mrb[0].mxu0
    %602 = vdwg.mxu0
    %vm603 = vcmp.gt.f32.partialorder %v598, 0.0
    %v604 = vmul.f32 %v598, 0.01
    %v605 = vsel %vm603, %v598, %v604
    %v606 = vpack.c.bf16 %v605, %v605
    %v607 = vld [vmem:[%s7] sm:$0xff]
    %v608 = vld [vmem:[%s7 + $0x8] sm:$0xff]
    %v609 = vld [vmem:[%s7 + $0x10] sm:$0xff]
    %v610 = vld [vmem:[%s7 + $0x18] sm:$0xff]
    %v611 = vld [vmem:[%s7 + $0x20] sm:$0xff]
    %v612 = vld [vmem:[%s7 + $0x28] sm:$0xff]
    %v613 = vld [vmem:[%s7 + $0x30] sm:$0xff]
    %v614 = vld [vmem:[%s7 + $0x38] sm:$0xff]
    %v615 = vld [vmem:[%s7 + $0x40] sm:$0xff]
    %v616 = vld [vmem:[%s7 + $0x48] sm:$0xff]
    %v617 = vld [vmem:[%s7 + $0x50] sm:$0xff]
    %v618 = vld [vmem:[%s7 + $0x58] sm:$0xff]
    %v619 = vld [vmem:[%s7 + $0x60] sm:$0xff]
    %v620 = vld [vmem:[%s7 + $0x68] sm:$0xff]
    %v621 = vld [vmem:[%s7 + $0x70] sm:$0xff]
    %v622 = vld [vmem:[%s7 + $0x78] sm:$0xff]
    %v623 = vld [vmem:[%s7 + $0x80] sm:$0xff]
    %v624 = vld [vmem:[%s7 + $0x88] sm:$0xff]
    %v625 = vld [vmem:[%s7 + $0x90] sm:$0xff]
    %v626 = vld [vmem:[%s7 + $0x98] sm:$0xff]
    %v627 = vld [vmem:[%s7 + $0xa0] sm:$0xff]
    %v628 = vld [vmem:[%s7 + $0xa8] sm:$0xff]
    %v629 = vld [vmem:[%s7 + $0xb0] sm:$0xff]
    %v630 = vld [vmem:[%s7 + $0xb8] sm:$0xff]
    %v631 = vld [vmem:[%s7 + $0xc0] sm:$0xff]
    %v632 = vld [vmem:[%s7 + $0xc8] sm:$0xff]
    %v633 = vld [vmem:[%s7 + $0xd0] sm:$0xff]
    %v634 = vld [vmem:[%s7 + $0xd8] sm:$0xff]
    %v635 = vld [vmem:[%s7 + $0xe0] sm:$0xff]
    %v636 = vld [vmem:[%s7 + $0xe8] sm:$0xff]
    %v637 = vld [vmem:[%s7 + $0xf0] sm:$0xff]
    %v638 = vld [vmem:[%s7 + $0xf8] sm:$0xff]
    %v639 = vld [vmem:[%s8] sm:$0xf]
    %v641 = vlaneseq
    %v642 = vshrl.u32 %v641, 7
    %v643 = vsub.s32 0, %v642
    %v644 = vrot.slane %v639, %v643
    %v645 = vlaneseq
    %v646 = vshrl.u32 %v645, 7
    %v647 = vsub.s32 1, %v646
    %v648 = vrot.slane %v639, %v647
    %v649 = vlaneseq
    %v650 = vshrl.u32 %v649, 7
    %v651 = vsub.s32 2, %v650
    %v652 = vrot.slane %v639, %v651
    %v653 = vlaneseq
    %v654 = vshrl.u32 %v653, 7
    %v655 = vsub.s32 3, %v654
    %v656 = vrot.slane %v639, %v655
    %v693 = vunpack.c.l.b16 %v607
    %v694 = vunpack.c.h.b16 %v607
    %v695 = vunpack.c.l.b16 %v608
    %v696 = vunpack.c.h.b16 %v608
    %v697 = vunpack.c.l.b16 %v609
    %v698 = vunpack.c.h.b16 %v609
    %v699 = vunpack.c.l.b16 %v610
    %v700 = vunpack.c.h.b16 %v610
    %v701 = vunpack.c.l.b16 %v611
    %v702 = vunpack.c.h.b16 %v611
    %v703 = vunpack.c.l.b16 %v612
    %v704 = vunpack.c.h.b16 %v612
    %v705 = vunpack.c.l.b16 %v613
    %v706 = vunpack.c.h.b16 %v613
    %v707 = vunpack.c.l.b16 %v614
    %v708 = vunpack.c.h.b16 %v614
    %v709 = vunpack.c.l.b16 %v615
    %v710 = vunpack.c.h.b16 %v615
    %v711 = vunpack.c.l.b16 %v616
    %v712 = vunpack.c.h.b16 %v616
    %v713 = vunpack.c.l.b16 %v617
    %v714 = vunpack.c.h.b16 %v617
    %v715 = vunpack.c.l.b16 %v618
    %v716 = vunpack.c.h.b16 %v618
    %v717 = vunpack.c.l.b16 %v619
    %v718 = vunpack.c.h.b16 %v619
    %v719 = vunpack.c.l.b16 %v620
    %v720 = vunpack.c.h.b16 %v620
    %v721 = vunpack.c.l.b16 %v621
    %v722 = vunpack.c.h.b16 %v621
    %v723 = vunpack.c.l.b16 %v622
    %v724 = vunpack.c.h.b16 %v622
    %v725 = vunpack.c.l.b16 %v623
    %v726 = vunpack.c.h.b16 %v623
    %v727 = vunpack.c.l.b16 %v624
    %v728 = vunpack.c.h.b16 %v624
    %v729 = vunpack.c.l.b16 %v625
    %v730 = vunpack.c.h.b16 %v625
    %v731 = vunpack.c.l.b16 %v626
    %v732 = vunpack.c.h.b16 %v626
    %v733 = vunpack.c.l.b16 %v627
    %v734 = vunpack.c.h.b16 %v627
    %v735 = vunpack.c.l.b16 %v628
    %v736 = vunpack.c.h.b16 %v628
    %v737 = vunpack.c.l.b16 %v629
    %v738 = vunpack.c.h.b16 %v629
    %v739 = vunpack.c.l.b16 %v630
    %v740 = vunpack.c.h.b16 %v630
    %v741 = vunpack.c.l.b16 %v631
    %v742 = vunpack.c.h.b16 %v631
    %v743 = vunpack.c.l.b16 %v632
    %v744 = vunpack.c.h.b16 %v632
    %v745 = vunpack.c.l.b16 %v633
    %v746 = vunpack.c.h.b16 %v633
    %v747 = vunpack.c.l.b16 %v634
    %v748 = vunpack.c.h.b16 %v634
    %v749 = vunpack.c.l.b16 %v635
    %v750 = vunpack.c.h.b16 %v635
    %v751 = vunpack.c.l.b16 %v636
    %v752 = vunpack.c.h.b16 %v636
    %v753 = vunpack.c.l.b16 %v637
    %v754 = vunpack.c.h.b16 %v637
    %v755 = vunpack.c.l.b16 %v638
    %v756 = vunpack.c.h.b16 %v638
    %v757 = vpack.c.b16 %v697, %v693
    %v758 = vpack.c.b16 %v698, %v694
    %v759 = vpack.c.b16 %v699, %v695
    %v760 = vpack.c.b16 %v700, %v696
    %v761 = vpack.c.b16 %v705, %v701
    %v762 = vpack.c.b16 %v706, %v702
    %v763 = vpack.c.b16 %v707, %v703
    %v764 = vpack.c.b16 %v708, %v704
    %v765 = vpack.c.b16 %v713, %v709
    %v766 = vpack.c.b16 %v714, %v710
    %v767 = vpack.c.b16 %v715, %v711
    %v768 = vpack.c.b16 %v716, %v712
    %v769 = vpack.c.b16 %v721, %v717
    %v770 = vpack.c.b16 %v722, %v718
    %v771 = vpack.c.b16 %v723, %v719
    %v772 = vpack.c.b16 %v724, %v720
    %v773 = vpack.c.b16 %v729, %v725
    %v774 = vpack.c.b16 %v730, %v726
    %v775 = vpack.c.b16 %v731, %v727
    %v776 = vpack.c.b16 %v732, %v728
    %v777 = vpack.c.b16 %v737, %v733
    %v778 = vpack.c.b16 %v738, %v734
    %v779 = vpack.c.b16 %v739, %v735
    %v780 = vpack.c.b16 %v740, %v736
    %v781 = vpack.c.b16 %v745, %v741
    %v782 = vpack.c.b16 %v746, %v742
    %v783 = vpack.c.b16 %v747, %v743
    %v784 = vpack.c.b16 %v748, %v744
    %v785 = vpack.c.b16 %v753, %v749
    %v786 = vpack.c.b16 %v754, %v750
    %v787 = vpack.c.b16 %v755, %v751
    %v788 = vpack.c.b16 %v756, %v752
    %821 = vmatprep.subr.bf16.mxu0 %v758
    %822 = vmatpush1.bf16.msra.mxu0 %v757
    %823 = vmatprep.subr.bf16.mxu0 %v762
    %824 = vmatpush1.bf16.msra.mxu0 %v761
    %825 = vmatprep.subr.bf16.mxu0 %v766
    %826 = vmatpush1.bf16.msra.mxu0 %v765
    %827 = vmatprep.subr.bf16.mxu0 %v770
    %828 = vmatpush1.bf16.msra.mxu0 %v769
    %829 = vmatprep.subr.bf16.mxu0 %v774
    %830 = vmatpush1.bf16.msra.mxu0 %v773
    %831 = vmatprep.subr.bf16.mxu0 %v778
    %832 = vmatpush1.bf16.msra.mxu0 %v777
    %833 = vmatprep.subr.bf16.mxu0 %v782
    %834 = vmatpush1.bf16.msra.mxu0 %v781
    %835 = vmatprep.subr.bf16.mxu0 %v786
    %836 = vmatpush1.bf16.msra.mxu0 %v785
    %837 = vmatprep.subr.bf16.mxu0 0
    %838 = vmatpush1.bf16.msra.mxu0 0
    %839 = vmatprep.subr.bf16.mxu0 0
    %840 = vmatpush1.bf16.msra.mxu0 0
    %841 = vmatprep.subr.bf16.mxu0 0
    %842 = vmatpush1.bf16.msra.mxu0 0
    %843 = vmatprep.subr.bf16.mxu0 0
    %844 = vmatpush1.bf16.msra.mxu0 0
    %845 = vmatprep.subr.bf16.mxu0 0
    %846 = vmatpush1.bf16.msra.mxu0 0
    %847 = vmatprep.subr.bf16.mxu0 0
    %848 = vmatpush1.bf16.msra.mxu0 0
    %849 = vmatprep.subr.bf16.mxu0 0
    %850 = vmatpush1.bf16.msra.mxu0 0
    %851 = vmatprep.subr.bf16.mxu0 0
    %852 = vmatpush1.bf16.msra.mxu0 0
    %853 = vmatprep.mubr.bf16.mxu0 0
    %854 = vmatmul.mubr.bf16.gmra.mrb[0].mxu0 %v606
    %v855 = vpop.f32.mrb[0].mxu0
    %v856 = vadd.f32 %v644, %v855
    %v857 = vpop.f32.mrb[0].mxu0
    %v858 = vadd.f32 %v648, %v857
    %v859 = vpop.f32.mrb[0].mxu0
    %v860 = vpop.f32.mrb[0].mxu0
    %861 = vdwg.mxu0
    %862 = vmatprep.subr.bf16.mxu0 %v760
    %863 = vmatpush1.bf16.msra.mxu0 %v759
    %864 = vmatprep.subr.bf16.mxu0 %v764
    %865 = vmatpush1.bf16.msra.mxu0 %v763
    %866 = vmatprep.subr.bf16.mxu0 %v768
    %867 = vmatpush1.bf16.msra.mxu0 %v767
    %868 = vmatprep.subr.bf16.mxu0 %v772
    %869 = vmatpush1.bf16.msra.mxu0 %v771
    %870 = vmatprep.subr.bf16.mxu0 %v776
    %871 = vmatpush1.bf16.msra.mxu0 %v775
    %872 = vmatprep.subr.bf16.mxu0 %v780
    %873 = vmatpush1.bf16.msra.mxu0 %v779
    %874 = vmatprep.subr.bf16.mxu0 %v784
    %875 = vmatpush1.bf16.msra.mxu0 %v783
    %876 = vmatprep.subr.bf16.mxu0 %v788
    %877 = vmatpush1.bf16.msra.mxu0 %v787
    %878 = vmatprep.subr.bf16.mxu0 0
    %879 = vmatpush1.bf16.msra.mxu0 0
    %880 = vmatprep.subr.bf16.mxu0 0
    %881 = vmatpush1.bf16.msra.mxu0 0
    %882 = vmatprep.subr.bf16.mxu0 0
    %883 = vmatpush1.bf16.msra.mxu0 0
    %884 = vmatprep.subr.bf16.mxu0 0
    %885 = vmatpush1.bf16.msra.mxu0 0
    %886 = vmatprep.subr.bf16.mxu0 0
    %887 = vmatpush1.bf16.msra.mxu0 0
    %888 = vmatprep.subr.bf16.mxu0 0
    %889 = vmatpush1.bf16.msra.mxu0 0
    %890 = vmatprep.subr.bf16.mxu0 0
    %891 = vmatpush1.bf16.msra.mxu0 0
    %892 = vmatprep.subr.bf16.mxu0 0
    %893 = vmatpush1.bf16.msra.mxu0 0
    %894 = vmatprep.mubr.bf16.mxu0 0
    %895 = vmatmul.mubr.bf16.gmra.mrb[0].mxu0 %v606
    %v896 = vpop.f32.mrb[0].mxu0
    %v897 = vadd.f32 %v652, %v896
    %v898 = vpop.f32.mrb[0].mxu0
    %v899 = vadd.f32 %v656, %v898
    %v900 = vpop.f32.mrb[0].mxu0
    %v901 = vpop.f32.mrb[0].mxu0
    %902 = vdwg.mxu0
    %903 = vst [vmem:[#allocation2] sm:$0xff] %v856
    %904 = vst [vmem:[#allocation2 + $0x8] sm:$0xff] %v858
    %905 = vst [vmem:[#allocation2 + $0x10] sm:$0xff] %v897
    %906 = vst.msk [vmem:[#allocation2 + $0x18] sm:$0xff] %vm289, %v899
    // Predicated region
    $region38: #{tpu_custom_call.1} parent=1 // pred_check
      _
    $region39: #{tpu_custom_call.1} parent=1 // pred_check_branch
      %908 = sbr.rel (0) target = $region41
    $region40: #{tpu_custom_call.1} parent=1 // pred_region
      %s910 = ssub.s32 512, 512
      %911 = vsyncadd [#allocation3], %s910
      %s913 = sshll.u32 [#allocation2], 4
      %s914 = int_to_ptr.vmem [resolvable:$true] %s913
      %916 = dma.vmem_to_hbm [thread:$0]  %s914, 512, %s9, [#allocation3]
    $region41: #{tpu_custom_call.1} parent=1 // pred_fallthru
      _
    // Predicated region
    $region42: #{tpu_custom_call.1} parent=1 // pred_check
      _
    $region43: #{tpu_custom_call.1} parent=1 // pred_check_branch
      %918 = sbr.rel (0) target = $region45
    $region44: #{tpu_custom_call.1} parent=1 // pred_region
      %919 = dma.done [#allocation3], 512
    $region45: #{tpu_custom_call.1} parent=1 // pred_fallthru
      _
    %920 = vsyncpa [#allocation3], 1

</llo_original>
